<compile_context>
chip_gen: v5e
topology: v5e:2x2
jax: 0.10.0
libtpu: 0.0.40
codegen_flags: <defaults>
</compile_context>

<pallas_src>
import functools

import jax
import jax.numpy as jnp
from jax import lax
from jax.experimental import pallas as pl
from jax.experimental.pallas import tpu as pltpu


def _metric_cosine_kernel(temp_ref, supp_ref, query_ref, out_ref, *, matmul_dtype):
    # temp_ref : SMEM (1,) f32 (scalar prefetch)
    # supp_ref : VMEM (bb, Nw, D)
    # query_ref: VMEM (bb, Nq, D)
    # out_ref  : VMEM (bb, Nq, Nw_pad)   lane-dense: Nw_pad % 128 == 0
    # F.normalize eps = 1e-12;  max(||x||, eps) == sqrt(max(sumsq, eps^2))
    eps2 = jnp.float32(1e-24)

    s = supp_ref[...].astype(jnp.float32)   # (bb, Nw, D)
    q = query_ref[...].astype(jnp.float32)  # (bb, Nq, D)

    # L2-normalize along the feature (lane) axis: EUP rsqrt + VPU multiply.
    s_inv = lax.rsqrt(jnp.maximum(jnp.sum(s * s, axis=-1, keepdims=True), eps2))
    q_inv = lax.rsqrt(jnp.maximum(jnp.sum(q * q, axis=-1, keepdims=True), eps2))
    # Fold temperature into the query scale: (q_n*temp) . s_n == (q_n . s_n) * temp.
    s_n = (s * s_inv).astype(matmul_dtype)
    q_n = (q * (q_inv * temp_ref[0])).astype(matmul_dtype)

    # Batched matmul contracting the last (D) dims, f32 accumulation on the MXU.
    # TODO(synk): verify with pl.lower_as_mlir that no padded (D, Nw) copy of s_n is
    # materialized per batch; if the kernel ever becomes MXU-visible at large D, pack
    # the bb per-batch matmuls into one (bb*Nq, D) x (D, bb*Nw) call instead.
    logits = lax.dot_general(
        q_n, s_n,
        dimension_numbers=(((2,), (2,)), ((0,), (0,))),
        preferred_element_type=jnp.float32)          # (bb, Nq, Nw)

    # Widen to the lane-dense output block; the zero lanes are sliced off in the wrapper.
    pad = out_ref.shape[-1] - logits.shape[-1]
    if pad:
        zeros = jnp.zeros(logits.shape[:-1] + (pad,), jnp.float32)
        logits = jnp.concatenate([logits, zeros], axis=-1)  # (bb, Nq, Nw_pad)

    out_ref[...] = logits.astype(out_ref.dtype)


def _vmem_limit_bytes():
    """Per-generation scoped-VMEM limit for this kernel (~half the physical VMEM)."""
    try:
        physical = int(pltpu.get_tpu_info().vmem_capacity_bytes)
    except Exception:
        physical = 64 << 20  # conservative (v7x-sized) fallback
    return max(16 << 20, min(physical // 2, 96 << 20))


def _pick_batch_block(B, Nw, Nq, D, nw_pad, in_itemsize, mm_itemsize, tile_budget):
    """Largest batch block whose VMEM footprint fits within ~tile_budget bytes."""
    per_b = (
        2 * in_itemsize * (Nw + Nq) * D   # supp+query input blocks, double-buffered
        + 2 * 4 * Nq * nw_pad             # padded f32 output block, double-buffered
        + 4 * (Nw + Nq) * D               # f32 normalized temporaries
        + mm_itemsize * (Nw + Nq) * D     # matmul-operand casts
        + 4 * Nw * D                      # possible transposed rhs copy for the MXU
        + 4 * Nq * nw_pad                 # f32 logits before the store
    )
    return max(1, int(tile_budget) // int(per_b))


def metric_cosine(supp_center, query_feature, temp, *, matmul_dtype=jnp.bfloat16):
    """supp_center: (B, Nw, D); query_feature: (B, Nq, D); temp: scalar parameter."""
    B, Nw, D = supp_center.shape
    Bq, Nq, Dq = query_feature.shape
    assert B == Bq and D == Dq

    nw_pad = max(128, ((Nw + 127) // 128) * 128)

    vmem_limit = _vmem_limit_bytes()
    tile_budget = int(0.65 * vmem_limit)  # headroom for intermediates / compiler scratch
    in_itemsize = max(jnp.dtype(supp_center.dtype).itemsize,
                      jnp.dtype(query_feature.dtype).itemsize)
    bb = _pick_batch_block(B, Nw, Nq, D, nw_pad, in_itemsize,
                           jnp.dtype(matmul_dtype).itemsize, tile_budget)
    bb = min(bb, B)
    if B >= 2:
        # >= 2 grid steps so ("parallel",) can shard across both v7x TensorCores
        # and the BlockSpec pipeline has something to overlap with.
        bb = min(bb, pl.cdiv(B, 2))
    # Prefer an exact divisor of B (no batch padding) when one is close enough.
    for cand in range(bb, 0, -1):
        if B % cand == 0:
            if 4 * cand >= 3 * bb:
                bb = cand
            break

    grid_b = pl.cdiv(B, bb)
    b_pad = grid_b * bb
    if b_pad != B:
        pad_b = b_pad - B  # zero rows are safe under the eps guard; sliced off below
        supp_center = jnp.pad(supp_center, ((0, pad_b), (0, 0), (0, 0)))
        query_feature = jnp.pad(query_feature, ((0, pad_b), (0, 0), (0, 0)))

    temp_arr = jnp.asarray(temp, jnp.float32).reshape((1,))
    kernel = functools.partial(_metric_cosine_kernel, matmul_dtype=matmul_dtype)

    out = pl.pallas_call(
        kernel,
        out_shape=jax.ShapeDtypeStruct((b_pad, Nq, nw_pad), jnp.float32),
        grid_spec=pltpu.PrefetchScalarGridSpec(
            num_scalar_prefetch=1,               # temp -> SMEM once, before the grid
            grid=(grid_b,),
            in_specs=[
                pl.BlockSpec((bb, Nw, D), lambda b, temp: (b, 0, 0)),       # supp
                pl.BlockSpec((bb, Nq, D), lambda b, temp: (b, 0, 0)),       # query
            ],
            out_specs=pl.BlockSpec((bb, Nq, nw_pad), lambda b, temp: (b, 0, 0)),
        ),
        compiler_params=pltpu.CompilerParams(
            dimension_semantics=("parallel",),
            vmem_limit_bytes=vmem_limit,
        ),
    )(temp_arr, supp_center, query_feature)

    # TODO(synk): when grid_b == 1, pipeline_mode=pl.Buffered(1) on the specs (or a
    # second parallel grid axis over Nq blocks) would halve pipeline VMEM / keep both
    # v7x cores busy; skipped here to keep the launcher simple and robust.
    return out[:B, :, :Nw]


def metric_cosine_ref(supp_center, query_feature, temp):
    """Pure-JAX reference mirroring the PyTorch forward."""
    eps = 1e-12
    s = supp_center / jnp.maximum(
        jnp.linalg.norm(supp_center, axis=-1, keepdims=True), eps)
    q = query_feature / jnp.maximum(
        jnp.linalg.norm(query_feature, axis=-1, keepdims=True), eps)
    return jnp.einsum("bqd,bwd->bqw", q, s) * temp


if __name__ == "__main__":
    key = jax.random.PRNGKey(0)
    k1, k2 = jax.random.split(key)

    B, Nw, Nq, D = 2, 5, 8, 32  # batch, #ways (support centers), #queries, feat dim
    supp_center = jax.random.normal(k1, (B, Nw, D), dtype=jnp.float32)
    query_feature = jax.random.normal(k2, (B, Nq, D), dtype=jnp.float32)

    # nn.Parameter(torch.tensor(10.0)) -> deterministic scalar init.
    temp = jnp.float32(10.0)

    ref = metric_cosine_ref(supp_center, query_feature, temp)

    # Default (perf) path: bf16 MXU operands, f32 accumulation.
    out = jax.block_until_ready(metric_cosine(supp_center, query_feature, temp))
    assert out.shape == (B, Nq, Nw)
    assert jnp.allclose(out, ref, atol=3e-2, rtol=3e-2)

    # Full-precision path: tight-tolerance check of the kernel structure.
    out_f32 = jax.block_until_ready(
        metric_cosine(supp_center, query_feature, temp, matmul_dtype=jnp.float32))
    assert out_f32.shape == (B, Nq, Nw)
    assert jnp.allclose(out_f32, ref, atol=1e-4, rtol=1e-4)

    print("KERNEL_OK")
</pallas_src>

<mosaic_0001>
module attributes {stable_mosaic.version = 11 : i64} {
  func.func @_metric_cosine_kernel(%arg0: i32, %arg1: memref<1xf32, #tpu.memory_space<smem>>, %arg2: memref<1x5x32xf32, #tpu.memory_space<vmem>>, %arg3: memref<1x8x32xf32, #tpu.memory_space<vmem>>, %arg4: memref<1x8x128xf32, #tpu.memory_space<vmem>>) attributes {dimension_semantics = [#tpu.dimension_semantics<parallel>], iteration_bounds = array<i64: 2>, scalar_prefetch = 1 : i64, scratch_operands = 0 : i64, tpu.core_type = #tpu.core_type<tc>, window_params = [{transform_indices = @transform_0, window_bounds = array<i64: 1, 5, 32>}, {transform_indices = @transform_1, window_bounds = array<i64: 1, 8, 32>}, {transform_indices = @transform_2, window_bounds = array<i64: 1, 8, 128>}]} {
    %c0 = arith.constant 0 : index
    %c0_0 = arith.constant 0 : index
    %c0_1 = arith.constant 0 : index
    %0 = vector.load %arg2[%c0, %c0_0, %c0_1] : memref<1x5x32xf32, #tpu.memory_space<vmem>>, vector<1x5x32xf32>
    %c0_2 = arith.constant 0 : index
    %c0_3 = arith.constant 0 : index
    %c0_4 = arith.constant 0 : index
    %1 = vector.load %arg3[%c0_2, %c0_3, %c0_4] : memref<1x8x32xf32, #tpu.memory_space<vmem>>, vector<1x8x32xf32>
    %2 = arith.mulf %0, %0 : vector<1x5x32xf32>
    %cst = arith.constant dense<0.000000e+00> : vector<1x5xf32>
    %3 = vector.multi_reduction <add>, %2, %cst [2] : vector<1x5x32xf32> to vector<1x5xf32>
    %4 = vector.shape_cast %3 : vector<1x5xf32> to vector<1x5x1xf32>
    %cst_5 = arith.constant 1.000000e-24 : f32
    %5 = vector.broadcast %cst_5 : f32 to vector<1x5x1xf32>
    %6 = arith.maximumf %4, %5 : vector<1x5x1xf32>
    %7 = math.rsqrt %6 : vector<1x5x1xf32>
    %8 = arith.mulf %1, %1 : vector<1x8x32xf32>
    %cst_6 = arith.constant dense<0.000000e+00> : vector<1x8xf32>
    %9 = vector.multi_reduction <add>, %8, %cst_6 [2] : vector<1x8x32xf32> to vector<1x8xf32>
    %10 = vector.shape_cast %9 : vector<1x8xf32> to vector<1x8x1xf32>
    %cst_7 = arith.constant 1.000000e-24 : f32
    %11 = vector.broadcast %cst_7 : f32 to vector<1x8x1xf32>
    %12 = arith.maximumf %10, %11 : vector<1x8x1xf32>
    %13 = math.rsqrt %12 : vector<1x8x1xf32>
    %14 = vector.broadcast %7 : vector<1x5x1xf32> to vector<1x5x32xf32>
    %15 = arith.mulf %0, %14 : vector<1x5x32xf32>
    %16 = arith.truncf %15 : vector<1x5x32xf32> to vector<1x5x32xbf16>
    %c0_8 = arith.constant 0 : index
    %17 = memref.load %arg1[%c0_8] : memref<1xf32, #tpu.memory_space<smem>>
    %18 = vector.broadcast %17 : f32 to vector<1x8x1xf32>
    %19 = arith.mulf %13, %18 : vector<1x8x1xf32>
    %20 = vector.broadcast %19 : vector<1x8x1xf32> to vector<1x8x32xf32>
    %21 = arith.mulf %1, %20 : vector<1x8x32xf32>
    %22 = arith.truncf %21 : vector<1x8x32xf32> to vector<1x8x32xbf16>
    %cst_9 = arith.constant dense<0.000000e+00> : vector<1x8x5xf32>
    %23 = tpu.matmul %22, %16, %cst_9 {dimension_numbers = #tpu.dot_dimension_numbers<[2], [2], [1], [1], [0, 0, 0, 1, 1, 1], [0], [0]>} : vector<1x8x32xbf16>, vector<1x5x32xbf16>, vector<1x8x5xf32> -> vector<1x8x5xf32>
    %cst_10 = arith.constant 0.000000e+00 : f32
    %24 = vector.broadcast %cst_10 : f32 to vector<1x8x123xf32>
    %25 = tpu.concatenate %23, %24 in 2 : vector<1x8x5xf32>, vector<1x8x123xf32> -> vector<1x8x128xf32>
    %c0_11 = arith.constant 0 : index
    %c0_12 = arith.constant 0 : index
    %c0_13 = arith.constant 0 : index
    %26 = vector.load %arg4[%c0_11, %c0_12, %c0_13] : memref<1x8x128xf32, #tpu.memory_space<vmem>>, vector<1x8x128xf32>
    tpu.vector_store %arg4[%c0_11, %c0_12, %c0_13], %25 {strides = array<i32>} : memref<1x8x128xf32, #tpu.memory_space<vmem>>, vector<1x8x128xf32>,
    return
  }
  func.func @transform_0(%arg0: i32, %arg1: memref<1xf32, #tpu.memory_space<smem>>) -> (i32, i32, i32) {
    %c0_i32 = arith.constant 0 : i32
    %c0_i32_0 = arith.constant 0 : i32
    %c0_i32_1 = arith.constant 0 : i32
    return %arg0, %c0_i32, %c0_i32_0 : i32, i32, i32
  }
  func.func @transform_1(%arg0: i32, %arg1: memref<1xf32, #tpu.memory_space<smem>>) -> (i32, i32, i32) {
    %c0_i32 = arith.constant 0 : i32
    %c0_i32_0 = arith.constant 0 : i32
    %c0_i32_1 = arith.constant 0 : i32
    return %arg0, %c0_i32, %c0_i32_0 : i32, i32, i32
  }
  func.func @transform_2(%arg0: i32, %arg1: memref<1xf32, #tpu.memory_space<smem>>) -> (i32, i32, i32) {
    %c0_i32 = arith.constant 0 : i32
    %c0_i32_0 = arith.constant 0 : i32
    %c0_i32_1 = arith.constant 0 : i32
    return %arg0, %c0_i32, %c0_i32_0 : i32, i32, i32
  }
}

</mosaic_0001>

<llo_original>
// kernel: tpu_custom_call.1
$region0: #{tpu_custom_call.1}
  #allocation0 [shape = 'u32[]', space=smem, size = 0x4, offset = 0x4, fixed_abs, tag = 'smem constant byte address 0x4 - core index']
  #allocation1 [shape = 'u32[72,128]{1,0:T(1,128)}', space=vmem, size = 0x9000, scoped, tag = 'internal scratch']
  #allocation2 [shape = 's32[1]{0}', space=sflag, size = 0x4, scoped, tag = 'scoped memory for tpu_custom_call.1']
  #allocation3 [shape = 'f32[1]{0:T(128)S(6)}', space=smem, size = 0x200, scoped, tag = 'prefetched SMEM operand 0']
  %s0 = inlined_call_operand.<no memory space> [shape: f32[1], index: 0, kind: input, shape index: {}]
  %s1 = inlined_call_operand.vmem [shape: f32[2,5,32], index: 1, kind: input, shape index: {}]
  %s2 = inlined_call_operand.vmem [shape: f32[2,8,32], index: 2, kind: input, shape index: {}]
  %s3 = inlined_call_operand.hbm [shape: f32[2,8,128], index: 3, kind: output, shape index: {}]
  %s4 = sld [smem:[#allocation0]]
  $region41: #{tpu_custom_call.1} parent=0
    _
  %s6 = ssub.s32 1, %s4
  %s7 = scalar_select 0, %s6, %s4
  %8 = sst [smem:[#allocation3]] %s0
  $region1: #{tpu_custom_call.1} parent=0
    #allocation4 [shape = 'u8[8192]{0}', space=vmem, size = 0x2000, scoped, tag = 'output window, operand 0']
    #allocation5 [shape = 's32[2]{0}', space=sflag, size = 0x8, scoped, tag = 'scoped memory for tpu_custom_call.1']
    %9 = vsyncpa [#allocation5], 0
    %s10 = scalar_lea.sflag [#allocation5], 1
    %11 = vsyncpa %s10, 0
    loop: start=0, step=1, limit=4
    $region2: #{tpu_custom_call.1} parent=1 // loop_pre_header
      _
    $region3: #{tpu_custom_call.1} parent=1 // loop_header
      %s13 = sphi 0, %s17
      %p14 = scmp.ge.s32.totalorder %s13, 4
      %s23 = sphi 0, %s25
      %s26 = sphi 0, %s23
      %s27 = sphi 0, %s26
      %s43 = sphi 0, %s27
      %s49 = sphi 0, %s51
      %s52 = sphi 0, %s49
      %s53 = sphi 0, %s52
      %s69 = sphi 0, %s53
      %s75 = sphi 0, %s77
      %s78 = sphi 0, %s75
      %s79 = sphi 0, %s78
      %s95 = sphi 0, %s79
    $region4: #{tpu_custom_call.1} parent=1 // loop_header_branch
      %16 = sbr.rel (%p14) target = $region8
    $region5: #{tpu_custom_call.1} parent=1 // loop_body
      %s18 = ssub.s32 %s13, 1
      %s19 = ssub.s32 %s13, 2
      %s20 = sadd.s32 %s13, 1
      %s21 = ssub.s32 %s13, %s20
      %p22 = scmp.eq.s32.totalorder %s21, 0
      %s24 = sadd.s32 %s23, 1
      %s25 = scalar_select %p22, %s23, %s24
      %p28 = pneg %p22
      %p29 = scmp.eq.s32.totalorder %s13, 1
      %p30 = por %p28, %p29
      %p31 = scmp.ne.s32.totalorder %s23, %s26
      %p32 = scmp.eq.s32.totalorder %s13, 0
      %p33 = por %p31, %p32
      %p34 = scmp.ne.s32.totalorder %s23, %s26
      %p35 = scmp.eq.s32.totalorder %s18, 1
      %p36 = por %p34, %p35
      %p37 = scmp.ne.s32.totalorder %s26, %s27
      %p38 = scmp.eq.s32.totalorder %s18, 0
      %p39 = por %p37, %p38
      %p40 = scmp.ne.s32.totalorder %s26, %s27
      %p41 = scmp.eq.s32.totalorder %s19, 1
      %p42 = por %p40, %p41
      %p44 = scmp.ne.s32.totalorder %s27, %s43
      %p45 = scmp.eq.s32.totalorder %s19, 0
      %p46 = por %p44, %p45
      %s47 = ssub.s32 %s13, %s20
      %p48 = scmp.eq.s32.totalorder %s47, 0
      %s50 = sadd.s32 %s49, 1
      %s51 = scalar_select %p48, %s49, %s50
      %p54 = pneg %p48
      %p55 = scmp.eq.s32.totalorder %s13, 1
      %p56 = por %p54, %p55
      %p57 = scmp.ne.s32.totalorder %s49, %s52
      %p58 = scmp.eq.s32.totalorder %s13, 0
      %p59 = por %p57, %p58
      %p60 = scmp.ne.s32.totalorder %s49, %s52
      %p61 = scmp.eq.s32.totalorder %s18, 1
      %p62 = por %p60, %p61
      %p63 = scmp.ne.s32.totalorder %s52, %s53
      %p64 = scmp.eq.s32.totalorder %s18, 0
      %p65 = por %p63, %p64
      %p66 = scmp.ne.s32.totalorder %s52, %s53
      %p67 = scmp.eq.s32.totalorder %s19, 1
      %p68 = por %p66, %p67
      %p70 = scmp.ne.s32.totalorder %s53, %s69
      %p71 = scmp.eq.s32.totalorder %s19, 0
      %p72 = por %p70, %p71
      %s73 = ssub.s32 %s13, %s20
      %p74 = scmp.eq.s32.totalorder %s73, 0
      %s76 = sadd.s32 %s75, 1
      %s77 = scalar_select %p74, %s75, %s76
      %p80 = pneg %p74
      %p81 = scmp.eq.s32.totalorder %s13, 1
      %p82 = por %p80, %p81
      %p83 = scmp.ne.s32.totalorder %s75, %s78
      %p84 = scmp.eq.s32.totalorder %s13, 0
      %p85 = por %p83, %p84
      %p86 = scmp.ne.s32.totalorder %s75, %s78
      %p87 = scmp.eq.s32.totalorder %s18, 1
      %p88 = por %p86, %p87
      %p89 = scmp.ne.s32.totalorder %s78, %s79
      %p90 = scmp.eq.s32.totalorder %s18, 0
      %p91 = por %p89, %p90
      %p92 = scmp.ne.s32.totalorder %s78, %s79
      %p93 = scmp.eq.s32.totalorder %s19, 1
      %p94 = por %p92, %p93
      %p96 = scmp.ne.s32.totalorder %s79, %s95
      %p97 = scmp.eq.s32.totalorder %s19, 0
      %p98 = por %p96, %p97
      %p99 = scmp.le.s32.totalorder 1, %s13
      %p100 = scmp.lt.s32.totalorder %s13, 3
      %p101 = pnand %p99, %p100
      %p102 = pneg %p101
      // Predicated region
      $region9: #{tpu_custom_call.1} parent=5 // pred_check
        _
      $region10: #{tpu_custom_call.1} parent=5 // pred_check_branch
        %104 = sbr.rel (%p101) target = $region12
      $region11: #{tpu_custom_call.1} parent=5 // pred_region
        %s105 = ssub.s32 %s13, 1
      $region12: #{tpu_custom_call.1} parent=5 // pred_fallthru
        _
      %p106 = scmp.lt.s32.totalorder %s13, 2
      // Predicated region
      $region13: #{tpu_custom_call.1} parent=5 // pred_check
        %p107 = pneg %p106
      $region14: #{tpu_custom_call.1} parent=5 // pred_check_branch
        %109 = sbr.rel (%p107) target = $region16
      $region15: #{tpu_custom_call.1} parent=5 // pred_region
        // Predicated region
        $region17: #{tpu_custom_call.1} parent=15 // pred_check
          %p110 = pneg %p33
        $region18: #{tpu_custom_call.1} parent=15 // pred_check_branch
          %112 = sbr.rel (%p110) target = $region20
        $region19: #{tpu_custom_call.1} parent=15 // pred_region
          %p113 = scmp.lt.s32.totalorder %s13, 1
          %s114 = scalar_select %p113, %s13, 1
          %s115 = smul.addr %s114, 8
          %s116 = scalar_lea.vmem %s1, %s115
        $region20: #{tpu_custom_call.1} parent=15 // pred_fallthru
          _
        // Predicated region
        $region21: #{tpu_custom_call.1} parent=15 // pred_check
          %p117 = pneg %p59
        $region22: #{tpu_custom_call.1} parent=15 // pred_check_branch
          %119 = sbr.rel (%p117) target = $region24
        $region23: #{tpu_custom_call.1} parent=15 // pred_region
          %p120 = scmp.lt.s32.totalorder %s13, 1
          %s121 = scalar_select %p120, %s13, 1
          %s122 = smul.addr %s121, 8
          %s123 = scalar_lea.vmem %s2, %s122
        $region24: #{tpu_custom_call.1} parent=15 // pred_fallthru
          _
      $region16: #{tpu_custom_call.1} parent=5 // pred_fallthru
        _
      %p124 = scmp.le.s32.totalorder 1, %s13
      %p125 = scmp.lt.s32.totalorder %s13, 3
      %p126 = pnand %p124, %p125
      %p127 = pneg %p126
      // Predicated region
      $region25: #{tpu_custom_call.1} parent=5 // pred_check
        _
      $region26: #{tpu_custom_call.1} parent=5 // pred_check_branch
        %129 = sbr.rel (%p126) target = $region28
      $region27: #{tpu_custom_call.1} parent=5 // pred_region
        %s130 = ssub.s32 %s13, 1
        %p131 = scmp.lt.s32.totalorder %s18, 1
        %s132 = scalar_select %p131, %s18, 1
        %s133 = smul.addr %s132, 8
        %s134 = scalar_lea.vmem %s1, %s133
        %p135 = pneg %p39
        %p136 = pneg %p36
        %p137 = scmp.lt.s32.totalorder %s18, 1
        %s138 = scalar_select %p137, %s18, 1
        %s139 = smul.addr %s138, 8
        %s140 = scalar_lea.vmem %s2, %s139
        %p141 = pneg %p65
        %p142 = pneg %p62
        %p143 = pneg %p91
        %p144 = pneg %p88
        %s145 = sand.u32 %s78, 1
        %s146 = scalar_lea.sflag [#allocation5], %s145
        %s147 = sand.u32 %s78, 1
        %s148 = smul.addr %s147, 8
        %s149 = scalar_lea.vmem [#allocation4], %s148
        %p150 = scmp.lt.s32.totalorder %s18, 1
        %s151 = scalar_select %p150, %s18, 1
        %s152 = smul.addr %s151, 8
        %s153 = scalar_lea.vmem %s1, %s152
        %p154 = scmp.lt.s32.totalorder %s18, 1
        %s155 = scalar_select %p154, %s18, 1
        %s156 = smul.addr %s155, 8
        %s157 = scalar_lea.vmem %s2, %s156
        %v159 = vld [vmem:[%s153] sm:$0x1f]
        %v160 = vld [vmem:[%s157] sm:$0xff]
        %v161 = vmul.f32 %v159, %v159
        %vm162 = vcmask 258048
        %v163 = vsel %vm162, %v161, 0.0
        %164 = vadd.xlane.f32.xlu0 %v163
        %v165 = vpop.xlane.xlu0 %164
        %v166 = vmax.f32 %v165, 1e-24
        %v167 = vrsqrt.pop %v166
        %v168 = vmul.f32 %v167, %v166
        %v169 = vmul.f32 %v168, %v167
        %v170 = vmul.f32 0.5, %v169
        %v171 = vsub.f32 1.5, %v170
        %v172 = vmul.f32 %v167, %v171
        %vm173 = vweird.f32 %v166
        %vm174 = vweird.f32 %v167
        %vm175 = vmor %vm173, %vm174
        %v176 = vsel %vm175, %v167, %v172
        %v177 = vmul.f32 %v160, %v160
        %vm178 = vcmask 261120
        %v179 = vsel %vm178, %v177, 0.0
        %180 = vadd.xlane.f32.xlu0 %v179
        %v181 = vpop.xlane.xlu0 %180
        %v182 = vmax.f32 %v181, 1e-24
        %v183 = vrsqrt.pop %v182
        %v184 = vmul.f32 %v183, %v182
        %v185 = vmul.f32 %v184, %v183
        %v186 = vmul.f32 0.5, %v185
        %v187 = vsub.f32 1.5, %v186
        %v188 = vmul.f32 %v183, %v187
        %vm189 = vweird.f32 %v182
        %vm190 = vweird.f32 %v183
        %vm191 = vmor %vm189, %vm190
        %v192 = vsel %vm191, %v183, %v188
        %v193 = vmul.f32 %v159, %v176
        %v194 = vpack.c.bf16 %v193, %v193
        %s195 = sld [smem:[#allocation3]]
        %v196 = vstv %s195
        %v197 = vmul.f32 %v192, %v196
        %v198 = vmul.f32 %v160, %v197
        %v199 = vpack.c.bf16 %v198, %v198
        %v201 = vsel %vm178, %v199, 0
        %v204 = vsel %vm178, %v194, 0
        %206 = vmatpush.bf16.xpose.msra.mxu0 0
        %207 = vmatpush.bf16.xpose.msra.mxu0 0
        %208 = vmatpush.bf16.xpose.msra.mxu0 0
        %209 = vmatpush.bf16.xpose.msra.mxu0 0
        %210 = vmatpush.bf16.xpose.msra.mxu0 0
        %211 = vmatpush.bf16.xpose.msra.mxu0 0
        %212 = vmatpush.bf16.xpose.msra.mxu0 0
        %213 = vmatpush.bf16.xpose.msra.mxu0 %v204
        %214 = vmatmul.bf16.gmra.mxu0 %v201
        %v215 = vpop.f32.mrf.mxu0
        %v216 = vadd.f32 0.0, %v215
        %v217 = vpop.f32.mrf.mxu0
        %218 = vdwg.mxu0
        %vm219 = vcmask 39936
        %v220 = vsel %vm219, %v216, 0.0
        %221 = vst [vmem:[%s149] sm:$0xff] %v220
        %s222 = sand.u32 %s78, 1
        %s223 = scalar_lea.sflag [#allocation5], %s222
        %s224 = sand.u32 %s78, 1
        %s225 = smul.addr %s224, 8
        %s226 = scalar_lea.vmem [#allocation4], %s225
        // Predicated region
        $region29: #{tpu_custom_call.1} parent=27 // pred_check
          %p227 = pneg %p88
        $region30: #{tpu_custom_call.1} parent=27 // pred_check_branch
          %229 = sbr.rel (%p227) target = $region32
        $region31: #{tpu_custom_call.1} parent=27 // pred_region
          %231 = vsyncadd %s223, 0
          %s232 = smul.addr %s18, 8
          %s233 = scalar_lea.hbm %s3, %s232
          %s235 = sshll.u32 %s226, 4
          %s236 = int_to_ptr.vmem [resolvable:$true] %s235
          %s237 = sshll.u32 %s233, 4
          %s238 = int_to_ptr.hbm [resolvable:$true] %s237
          %240 = dma.vmem_to_hbm [thread:$0]  %s236, 128, %s238, %s223
        $region32: #{tpu_custom_call.1} parent=27 // pred_fallthru
          _
      $region28: #{tpu_custom_call.1} parent=5 // pred_fallthru
        _
      %p241 = scmp.le.s32.totalorder 2, %s13
      // Predicated region
      $region33: #{tpu_custom_call.1} parent=5 // pred_check
        %p242 = pneg %p241
      $region34: #{tpu_custom_call.1} parent=5 // pred_check_branch
        %244 = sbr.rel (%p242) target = $region36
      $region35: #{tpu_custom_call.1} parent=5 // pred_region
        %s245 = ssub.s32 %s13, 2
        // Predicated region
        $region37: #{tpu_custom_call.1} parent=35 // pred_check
          %p246 = pneg %p94
        $region38: #{tpu_custom_call.1} parent=35 // pred_check_branch
          %248 = sbr.rel (%p246) target = $region40
        $region39: #{tpu_custom_call.1} parent=35 // pred_region
          %s249 = sand.u32 %s79, 1
          %s250 = scalar_lea.sflag [#allocation5], %s249
          %s251 = sand.u32 %s79, 1
          %s252 = smul.addr %s251, 8
          %s253 = scalar_lea.vmem [#allocation4], %s252
          %255 = dma.done %s250, 128
        $region40: #{tpu_custom_call.1} parent=35 // pred_fallthru
          _
      $region36: #{tpu_custom_call.1} parent=5 // pred_fallthru
        _
    $region6: #{tpu_custom_call.1} parent=1 // loop_footer
      %s17 = sadd.s32 1, %s13
    $region7: #{tpu_custom_call.1} parent=1 // loop_footer_branch
      %12 = sbr.rel target = $region3
    $region8: #{tpu_custom_call.1} parent=1 // loop_exit
      _
    %256 = vsyncpa [#allocation5], 1
    %s257 = scalar_lea.sflag [#allocation5], 1
    %258 = vsyncpa %s257, 1

</llo_original>
